<compile_context>
chip_gen: v5e
topology: v5e:2x2
jax: 0.10.0
libtpu: 0.0.40
codegen_flags: <defaults>
</compile_context>

<pallas_src>
import functools

import jax
import jax.numpy as jnp
from jax.experimental import pallas as pl
from jax.experimental.pallas import tpu as pltpu


_VMEM_LIMIT = 32 * 1024 * 1024           # safe on v5e/v6e (128 MiB) and v7x (64 MiB)
_STREAM_BLOCK_BUDGET = 16 * 1024 * 1024  # 4 pipelined buffers in the scale kernel
_FUSED_BUDGET = 16 * 1024 * 1024         # x + out resident in VMEM (no pipelining)


def _make_divisible(v, divisor, min_value=None):
    if min_value is None:
        min_value = divisor
    new_v = max(min_value, int(v + divisor / 2) // divisor * divisor)
    if new_v < 0.9 * v:
        new_v += divisor
    return new_v


def _round_up(v, m):
    return -(-v // m) * m


def _sublane_pack(itemsize):
    # rows per packed sublane tile: f32 -> 8, bf16 -> 16, int8 -> 32
    return max(8, (8 * 4) // itemsize)


def _padded_bytes(b, c, s, itemsize):
    """Layout-accurate VMEM bytes of a (b, c, s) block (sublane/lane padding)."""
    return b * _round_up(c, _sublane_pack(itemsize)) * _round_up(s, 128) * itemsize


def _pick_channel_tile(b, c, s, itemsize, n_buffers=4, budget=_STREAM_BLOCK_BUDGET):
    """Channel tile Ct for (B, Ct, S) blocks: a sublane-aligned divisor of C
    (or C itself) whose n_buffers-deep footprint fits `budget`, preferring the
    largest tile that still leaves >= 2 grid steps (pipelining / megacore)."""
    step = _sublane_pack(itemsize)
    if c % step != 0:
        return c                      # small / odd C: full-extent channel dim
    divisors = [d for d in range(step, c + 1, step) if c % d == 0]
    fitting = [d for d in divisors
               if n_buffers * _padded_bytes(b, d, s, itemsize) <= budget]
    if not fitting:
        # Even the minimal aligned tile exceeds the budget (pathological B*S);
        # take it and rely on the explicit vmem_limit_bytes.
        return step
    multi = [d for d in fitting if c // d >= 2]
    return max(multi) if multi else max(fitting)


def _hsigmoid_gate(pooled, w1, b1, w2, b2):
    """FC1 -> ReLU -> FC2 -> h_sigmoid on the pooled (B, C) tensor, f32 accum."""
    h = jnp.dot(pooled, w1.astype(jnp.float32),
                preferred_element_type=jnp.float32)
    h = jnp.maximum(h + b1.astype(jnp.float32), 0.0)
    g = jnp.dot(h, w2.astype(jnp.float32),
                preferred_element_type=jnp.float32) + b2.astype(jnp.float32)
    return jnp.clip(g + 3.0, 0.0, 6.0) * (1.0 / 6.0)     # relu6(g + 3) / 6


# ---------------------------------------------------------------------------
# Kernels
# ---------------------------------------------------------------------------
def _se_fused_kernel(x_ref, w1_ref, b1_ref, w2_ref, b2_ref, o_ref, *, hw):
    """Single-pass SE: whole (B, C, S) activation resident in VMEM."""
    x = x_ref[...]
    pooled = jnp.sum(x.astype(jnp.float32), axis=2) * (1.0 / hw)      # (B, C)
    g = _hsigmoid_gate(pooled, w1_ref[...], b1_ref[...], w2_ref[...], b2_ref[...])
    o_ref[...] = x * g.astype(x.dtype)[:, :, None]        # native-dtype scale


def _se_pool_kernel(x_ref, pooled_ref, *, hw):
    """Per C-chunk spatial mean: (B, Ct, S) -> (B, Ct, 1), f32 accumulation."""
    s = jnp.sum(x_ref[...].astype(jnp.float32), axis=2, keepdims=True)
    pooled_ref[...] = s * (1.0 / hw)


def _se_fc_kernel(pooled_ref, w1_ref, b1_ref, w2_ref, b2_ref, gate_ref):
    """Tiny gate kernel: FC1 -> ReLU -> FC2 -> h_sigmoid on pooled (B, C)."""
    g = _hsigmoid_gate(pooled_ref[...], w1_ref[...], b1_ref[...],
                       w2_ref[...], b2_ref[...])
    gate_ref[...] = g.astype(gate_ref.dtype)


def _se_scale_kernel(x_ref, gate_ref, o_ref):
    """out = x * gate, native dtype, gate broadcast over the spatial axis."""
    o_ref[...] = x_ref[...] * gate_ref[...]


# ---------------------------------------------------------------------------
# Wrapper
# ---------------------------------------------------------------------------
def se_layer(x, w1, b1, w2, b2, *, max_fused_bytes=_FUSED_BUDGET):
    """SELayer forward.  x: (B, C, H, W) NCHW; w1: (C, Cr), b1: (1, Cr),
    w2: (Cr, C), b2: (1, C)."""
    B, C, H, W = x.shape
    S = H * W
    x3 = x.reshape(B, C, S)                       # contiguous merge, no copy
    itemsize = jnp.dtype(x.dtype).itemsize
    x_bytes = _padded_bytes(B, C, S, itemsize)
    w_bytes = 4 * (w1.size + b1.size + w2.size + b2.size)
    params = pltpu.CompilerParams(vmem_limit_bytes=_VMEM_LIMIT)

    # ---- Fused single-pass path: 1 HBM read + 1 HBM write of x ----
    if 2 * x_bytes + w_bytes <= max_fused_bytes:
        out3 = pl.pallas_call(
            functools.partial(_se_fused_kernel, hw=float(S)),
            out_shape=jax.ShapeDtypeStruct((B, C, S), x.dtype),
            compiler_params=params,
        )(x3, w1, b1, w2, b2)
        return out3.reshape(B, C, H, W)

    # ---- Streaming path: channel-tiled, spatial axis full extent ----
    ct = _pick_channel_tile(B, C, S, itemsize)
    n_chunks = C // ct
    par = pltpu.CompilerParams(dimension_semantics=("parallel",),
                               vmem_limit_bytes=_VMEM_LIMIT)

    # Kernel A: spatial mean per channel chunk (x read #1).
    pooled = pl.pallas_call(
        functools.partial(_se_pool_kernel, hw=float(S)),
        out_shape=jax.ShapeDtypeStruct((B, C, 1), jnp.float32),
        grid_spec=pltpu.PrefetchScalarGridSpec(
            num_scalar_prefetch=0,
            grid=(n_chunks,),
            in_specs=[pl.BlockSpec((B, ct, S), lambda c: (0, c, 0))],
            out_specs=pl.BlockSpec((B, ct, 1), lambda c: (0, c, 0)),
        ),
        compiler_params=par,
    )(x3)

    # Kernel B: tiny FC1 -> ReLU -> FC2 -> h_sigmoid gate on (B, C).
    gate = pl.pallas_call(
        _se_fc_kernel,
        out_shape=jax.ShapeDtypeStruct((B, C), x.dtype),
        compiler_params=params,
    )(pooled.reshape(B, C), w1, b1, w2, b2)

    # Kernel C: channel-wise scale (x read #2 + write), native dtype.
    out3 = pl.pallas_call(
        _se_scale_kernel,
        out_shape=jax.ShapeDtypeStruct((B, C, S), x.dtype),
        grid_spec=pltpu.PrefetchScalarGridSpec(
            num_scalar_prefetch=0,
            grid=(n_chunks,),
            in_specs=[pl.BlockSpec((B, ct, S), lambda c: (0, c, 0)),
                      pl.BlockSpec((B, ct, 1), lambda c: (0, c, 0))],
            out_specs=pl.BlockSpec((B, ct, S), lambda c: (0, c, 0)),
        ),
        compiler_params=par,
    )(x3, gate.reshape(B, C, 1))

    return out3.reshape(B, C, H, W)


# ---------------------------------------------------------------------------
# Self-test
# ---------------------------------------------------------------------------
def _se_reference(x, w1, b1, w2, b2):
    pooled = jnp.mean(x.astype(jnp.float32), axis=(2, 3))
    h = jnp.maximum(
        jnp.dot(pooled, w1, precision=jax.lax.Precision.HIGHEST) + b1, 0.0)
    g = jnp.dot(h, w2, precision=jax.lax.Precision.HIGHEST) + b2
    g = jnp.clip(g + 3.0, 0.0, 6.0) / 6.0
    return (x * g[:, :, None, None]).astype(x.dtype)


if __name__ == "__main__":
    key = jax.random.PRNGKey(0)

    def make_inputs(k, B, C, H, W, reduction=4):
        Cr = _make_divisible(C // reduction, 8)
        k0, k1, k2, k3, k4 = jax.random.split(k, 5)
        x = jax.random.normal(k0, (B, C, H, W), dtype=jnp.float32) * 2.0
        w1 = jax.random.normal(k1, (C, Cr), dtype=jnp.float32) * 0.5
        b1 = jax.random.normal(k2, (1, Cr), dtype=jnp.float32) * 0.1
        w2 = jax.random.normal(k3, (Cr, C), dtype=jnp.float32) * 0.5
        b2 = jax.random.normal(k4, (1, C), dtype=jnp.float32) * 0.1
        return x, w1, b1, w2, b2

    k_a, k_b = jax.random.split(key)

    # Case 1: nominal small shape -> exercises the fused single-pass path.
    xa, w1a, b1a, w2a, b2a = make_inputs(k_a, 2, 4, 16, 16)
    out_a = jax.block_until_ready(se_layer(xa, w1a, b1a, w2a, b2a))
    ref_a = _se_reference(xa, w1a, b1a, w2a, b2a)
    assert out_a.shape == xa.shape and out_a.dtype == xa.dtype
    assert jnp.allclose(out_a, ref_a, atol=5e-3, rtol=5e-3), "fused path mismatch"

    # Case 2: MobileNetV3-like shape (S = 49, not a multiple of 128; C = 16
    # tiled in chunks of 8) forced down the streaming channel-tiled path.
    xb, w1b, b1b, w2b, b2b = make_inputs(k_b, 2, 16, 7, 7)
    out_b = jax.block_until_ready(
        se_layer(xb, w1b, b1b, w2b, b2b, max_fused_bytes=0))
    ref_b = _se_reference(xb, w1b, b1b, w2b, b2b)
    assert out_b.shape == xb.shape and out_b.dtype == xb.dtype
    assert jnp.allclose(out_b, ref_b, atol=5e-3, rtol=5e-3), "streaming path mismatch"

    print("KERNEL_OK")
</pallas_src>

<mosaic_0001>
module attributes {stable_mosaic.version = 11 : i64} {
  func.func @_se_fused_kernel(%arg0: memref<2x4x256xf32, #tpu.memory_space<vmem>>, %arg1: memref<4x8xf32, #tpu.memory_space<vmem>>, %arg2: memref<1x8xf32, #tpu.memory_space<vmem>>, %arg3: memref<8x4xf32, #tpu.memory_space<vmem>>, %arg4: memref<1x4xf32, #tpu.memory_space<vmem>>, %arg5: memref<2x4x256xf32, #tpu.memory_space<vmem>>) attributes {dimension_semantics = [], scalar_prefetch = 0 : i64, scratch_operands = 0 : i64, tpu.core_type = #tpu.core_type<tc>} {
    %c0 = arith.constant 0 : index
    %c0_0 = arith.constant 0 : index
    %c0_1 = arith.constant 0 : index
    %0 = vector.load %arg0[%c0, %c0_0, %c0_1] : memref<2x4x256xf32, #tpu.memory_space<vmem>>, vector<2x4x256xf32>
    %cst = arith.constant dense<0.000000e+00> : vector<2x4xf32>
    %1 = vector.multi_reduction <add>, %0, %cst [2] : vector<2x4x256xf32> to vector<2x4xf32>
    %cst_2 = arith.constant 3.906250e-03 : f32
    %2 = vector.broadcast %cst_2 : f32 to vector<2x4xf32>
    %3 = arith.mulf %1, %2 : vector<2x4xf32>
    %c0_3 = arith.constant 0 : index
    %c0_4 = arith.constant 0 : index
    %4 = vector.load %arg1[%c0_3, %c0_4] : memref<4x8xf32, #tpu.memory_space<vmem>>, vector<4x8xf32>
    %c0_5 = arith.constant 0 : index
    %c0_6 = arith.constant 0 : index
    %5 = vector.load %arg2[%c0_5, %c0_6] : memref<1x8xf32, #tpu.memory_space<vmem>>, vector<1x8xf32>
    %c0_7 = arith.constant 0 : index
    %c0_8 = arith.constant 0 : index
    %6 = vector.load %arg3[%c0_7, %c0_8] : memref<8x4xf32, #tpu.memory_space<vmem>>, vector<8x4xf32>
    %c0_9 = arith.constant 0 : index
    %c0_10 = arith.constant 0 : index
    %7 = vector.load %arg4[%c0_9, %c0_10] : memref<1x4xf32, #tpu.memory_space<vmem>>, vector<1x4xf32>
    %cst_11 = arith.constant dense<0.000000e+00> : vector<2x8xf32>
    %8 = tpu.matmul %3, %4, %cst_11 {dimension_numbers = #tpu.dot_dimension_numbers<[1], [0], [0], [1], [0, 0, 1, 1], [], []>} : vector<2x4xf32>, vector<4x8xf32>, vector<2x8xf32> -> vector<2x8xf32>
    %9 = vector.broadcast %5 : vector<1x8xf32> to vector<2x8xf32>
    %10 = arith.addf %8, %9 : vector<2x8xf32>
    %cst_12 = arith.constant 0.000000e+00 : f32
    %11 = vector.broadcast %cst_12 : f32 to vector<2x8xf32>
    %12 = arith.maximumf %10, %11 : vector<2x8xf32>
    %cst_13 = arith.constant dense<0.000000e+00> : vector<2x4xf32>
    %13 = tpu.matmul %12, %6, %cst_13 {dimension_numbers = #tpu.dot_dimension_numbers<[1], [0], [0], [1], [0, 0, 1, 1], [], []>} : vector<2x8xf32>, vector<8x4xf32>, vector<2x4xf32> -> vector<2x4xf32>
    %14 = vector.broadcast %7 : vector<1x4xf32> to vector<2x4xf32>
    %15 = arith.addf %13, %14 : vector<2x4xf32>
    %cst_14 = arith.constant 3.000000e+00 : f32
    %16 = vector.broadcast %cst_14 : f32 to vector<2x4xf32>
    %17 = arith.addf %15, %16 : vector<2x4xf32>
    %cst_15 = arith.constant 0.000000e+00 : f32
    %cst_16 = arith.constant 6.000000e+00 : f32
    %18 = vector.broadcast %cst_15 : f32 to vector<2x4xf32>
    %19 = arith.maximumf %18, %17 : vector<2x4xf32>
    %20 = vector.broadcast %cst_16 : f32 to vector<2x4xf32>
    %21 = arith.minimumf %20, %19 : vector<2x4xf32>
    %cst_17 = arith.constant 0.166666672 : f32
    %22 = vector.broadcast %cst_17 : f32 to vector<2x4xf32>
    %23 = arith.mulf %21, %22 : vector<2x4xf32>
    %24 = vector.shape_cast %23 : vector<2x4xf32> to vector<2x4x1xf32>
    %25 = vector.broadcast %24 : vector<2x4x1xf32> to vector<2x4x256xf32>
    %26 = arith.mulf %0, %25 : vector<2x4x256xf32>
    %c0_18 = arith.constant 0 : index
    %c0_19 = arith.constant 0 : index
    %c0_20 = arith.constant 0 : index
    %27 = vector.load %arg5[%c0_18, %c0_19, %c0_20] : memref<2x4x256xf32, #tpu.memory_space<vmem>>, vector<2x4x256xf32>
    tpu.vector_store %arg5[%c0_18, %c0_19, %c0_20], %26 {strides = array<i32>} : memref<2x4x256xf32, #tpu.memory_space<vmem>>, vector<2x4x256xf32>,
    return
  }
}

</mosaic_0001>

<llo_original>
// kernel: tpu_custom_call.1
$region0: #{tpu_custom_call.1}
  #allocation0 [shape = 'u32[]', space=smem, size = 0x4, offset = 0x4, fixed_abs, tag = 'smem constant byte address 0x4 - core index']
  #allocation1 [shape = 'u32[72,128]{1,0:T(1,128)}', space=vmem, size = 0x9000, scoped, tag = 'internal scratch']
  %s0 = inlined_call_operand.hbm [shape: f32[2,4,256], index: 0, kind: input, shape index: {}]
  %s1 = inlined_call_operand.vmem [shape: f32[4,8], index: 1, kind: input, shape index: {}]
  %s2 = inlined_call_operand.vmem [shape: f32[1,8], index: 2, kind: input, shape index: {}]
  %s3 = inlined_call_operand.vmem [shape: f32[8,4], index: 3, kind: input, shape index: {}]
  %s4 = inlined_call_operand.vmem [shape: f32[1,4], index: 4, kind: input, shape index: {}]
  %s5 = inlined_call_operand.hbm [shape: f32[2,4,256], index: 5, kind: output, shape index: {}]
  %s6 = sld [smem:[#allocation0]]
  $region34: #{tpu_custom_call.1} parent=0
    _
  %s8 = ssub.s32 1, %s6
  %s9 = scalar_select 0, %s8, %s6
  $region1: #{tpu_custom_call.1} parent=0
    #allocation2 [shape = 'u8[8192]{0}', space=vmem, size = 0x2000, scoped, tag = 'input window, operand 0, single buffered']
    #allocation3 [shape = 's32[1]{0}', space=sflag, size = 0x4, scoped, tag = 'scoped memory for tpu_custom_call.1']
    #allocation4 [shape = 's32[1]{0}', space=sflag, size = 0x4, scoped, tag = 'scoped memory for tpu_custom_call.1']
    #allocation5 [shape = 'u8[8192]{0}', space=vmem, size = 0x2000, scoped, tag = 'output window, operand 0, single buffered']
    %10 = vsyncpa [#allocation3], 0
    %11 = vsyncpa [#allocation4], 0
    // Predicated region
    $region2: #{tpu_custom_call.1} parent=1 // pred_check
      _
    $region3: #{tpu_custom_call.1} parent=1 // pred_check_branch
      %13 = sbr.rel (0) target = $region5
    $region4: #{tpu_custom_call.1} parent=1 // pred_region
      %15 = vsyncadd [#allocation3], 0
      %s16 = sshll.u32 %s0, 4
      %s17 = int_to_ptr.hbm [resolvable:$true] %s16
      %s18 = sshll.u32 [#allocation2], 4
      %s19 = int_to_ptr.vmem [resolvable:$true] %s18
      %24 = dma.hbm_to_vmem [thread:$0]  %s17, 256, %s19, [#allocation3], 128, 128, 8
    $region5: #{tpu_custom_call.1} parent=1 // pred_fallthru
      _
    // Predicated region
    $region6: #{tpu_custom_call.1} parent=1 // pred_check
      _
    $region7: #{tpu_custom_call.1} parent=1 // pred_check_branch
      %26 = sbr.rel (0) target = $region9
    $region8: #{tpu_custom_call.1} parent=1 // pred_region
      _
    $region9: #{tpu_custom_call.1} parent=1 // pred_fallthru
      _
    // Predicated region
    $region10: #{tpu_custom_call.1} parent=1 // pred_check
      _
    $region11: #{tpu_custom_call.1} parent=1 // pred_check_branch
      %28 = sbr.rel (0) target = $region13
    $region12: #{tpu_custom_call.1} parent=1 // pred_region
      _
    $region13: #{tpu_custom_call.1} parent=1 // pred_fallthru
      _
    // Predicated region
    $region14: #{tpu_custom_call.1} parent=1 // pred_check
      _
    $region15: #{tpu_custom_call.1} parent=1 // pred_check_branch
      %30 = sbr.rel (0) target = $region17
    $region16: #{tpu_custom_call.1} parent=1 // pred_region
      _
    $region17: #{tpu_custom_call.1} parent=1 // pred_fallthru
      _
    // Predicated region
    $region18: #{tpu_custom_call.1} parent=1 // pred_check
      _
    $region19: #{tpu_custom_call.1} parent=1 // pred_check_branch
      %32 = sbr.rel (0) target = $region21
    $region20: #{tpu_custom_call.1} parent=1 // pred_region
      _
    $region21: #{tpu_custom_call.1} parent=1 // pred_fallthru
      _
    // Predicated region
    $region22: #{tpu_custom_call.1} parent=1 // pred_check
      _
    $region23: #{tpu_custom_call.1} parent=1 // pred_check_branch
      %34 = sbr.rel (0) target = $region25
    $region24: #{tpu_custom_call.1} parent=1 // pred_region
      %36 = dma.done [#allocation3], 256
    $region25: #{tpu_custom_call.1} parent=1 // pred_fallthru
      _
    %v37 = vld [vmem:[#allocation2] sm:$0xff]
    %v38 = vld [vmem:[#allocation2 + $0x8] sm:$0xff]
    %41 = vst [vmem:[#allocation1] ss:$2 sm:$0xff] %v37
    %v42 = vld.sshfl [vmem:[#allocation1] sm:$0xff pattern:$0x75316420]
    %v43 = vld.sshfl [vmem:[#allocation1 + $0x8] sm:$0xff pattern:$0x75316420]
    %s44 = scalar_lea.vmem [#allocation1], 16
    %45 = vst [vmem:[%s44] ss:$2 sm:$0xff] %v38
    %v46 = vld.sshfl [vmem:[#allocation1 + $0x10] sm:$0xff pattern:$0x75316420]
    %v47 = vld.sshfl [vmem:[#allocation1 + $0x18] sm:$0xff pattern:$0x75316420]
    %vm52 = vcmask 1043456
    %v53 = vsel %vm52, %v42, 0.0
    %v54 = vsel %vm52, %v43, 0.0
    %v55 = vadd.f32 %v53, %v54
    %56 = vadd.xlane.f32.xlu0 %v55
    %v57 = vpop.xlane.xlu0 %56
    %v58 = vsel %vm52, %v46, 0.0
    %v59 = vsel %vm52, %v47, 0.0
    %v60 = vadd.f32 %v58, %v59
    %61 = vadd.xlane.f32.xlu0 %v60
    %v62 = vpop.xlane.xlu0 %61
    %v63 = vmul.f32 %v57, 0.00390625
    %v64 = vmul.f32 %v62, 0.00390625
    %v65 = vld [vmem:[%s1] sm:$0xf]
    %v66 = vld [vmem:[%s2] sm:$0x1]
    %v67 = vld [vmem:[%s3] sm:$0xff]
    %v68 = vld [vmem:[%s4] sm:$0x1]
    %v70 = vperm.slane %v66, 0
    %v74 = vlaneseq
    %v75 = vand.u32 %v74, 127
    %v76 = vperm.slane %v63, %v75
    %v77 = vperm.slane %v64, %v75
    %vm78 = vcmask 1041409
    %v79 = vsel %vm78, %v77, %v76
    %vm80 = vcmask 31744
    %v81 = vsel %vm80, %v79, 0
    %v84 = vsel %vm52, %v65, 0
    %86 = vmatpush.msra.mxu0 0.0
    %87 = vmatpush.msra.mxu0 0.0
    %88 = vmatpush.msra.mxu0 0.0
    %89 = vmatpush.msra.mxu0 0.0
    %90 = vmatpush.msra.mxu0 0.0
    %91 = vmatpush.msra.mxu0 0.0
    %92 = vmatpush.msra.mxu0 0.0
    %93 = vmatpush.msra.mxu0 0.0
    %94 = vmatpush.msra.mxu0 0.0
    %95 = vmatpush.msra.mxu0 0.0
    %96 = vmatpush.msra.mxu0 0.0
    %97 = vmatpush.msra.mxu0 0.0
    %98 = vmatpush.msra.mxu0 0.0
    %99 = vmatpush.msra.mxu0 0.0
    %100 = vmatpush.msra.mxu0 0.0
    %101 = vmatpush.msra.mxu0 %v84
    %102 = vmatmul.f32.gmra.mxu0 %v81
    %v103 = vpop.f32.mrf.mxu0
    %v104 = vadd.f32 %v70, %v103
    %105 = vdwg.mxu0
    %v106 = vmax.f32 %v104, 0.0
    %v108 = vperm.slane %v68, 0
    %vm110 = vcmask 64512
    %v112 = vsel %vm110, %v106, 0
    %114 = vmatpush.msra.mxu0 0.0
    %115 = vmatpush.msra.mxu0 0.0
    %116 = vmatpush.msra.mxu0 0.0
    %117 = vmatpush.msra.mxu0 0.0
    %118 = vmatpush.msra.mxu0 0.0
    %119 = vmatpush.msra.mxu0 0.0
    %120 = vmatpush.msra.mxu0 0.0
    %121 = vmatpush.msra.mxu0 0.0
    %122 = vmatpush.msra.mxu0 0.0
    %123 = vmatpush.msra.mxu0 0.0
    %124 = vmatpush.msra.mxu0 0.0
    %125 = vmatpush.msra.mxu0 0.0
    %126 = vmatpush.msra.mxu0 0.0
    %127 = vmatpush.msra.mxu0 0.0
    %128 = vmatpush.msra.mxu0 0.0
    %129 = vmatpush.msra.mxu0 %v67
    %130 = vmatmul.f32.gmra.mxu0 %v112
    %v131 = vpop.f32.mrf.mxu0
    %v132 = vadd.f32 %v108, %v131
    %133 = vdwg.mxu0
    %v134 = vadd.f32 %v132, 3.0
    %v135 = vmax.f32 %v134, 0.0
    %v136 = vmin.f32 %v135, 6.0
    %v137 = vmul.f32 %v136, 0.16666667
    %v138 = vperm.slane %v137, 0
    %v139 = vlaneseq
    %v140 = vshrl.u32 %v139, 7
    %142 = vset.pattern.permute.xlu0 %v140
    %143 = vperm.xlu0 %142, %v138
    %v144 = vpop.permute.xlu0 %143
    %v145 = vperm.slane %v137, 1
    %v146 = vlaneseq
    %v147 = vshrl.u32 %v146, 7
    %149 = vset.pattern.permute.xlu0 %v147
    %150 = vperm.xlu0 %149, %v145
    %v151 = vpop.permute.xlu0 %150
    %v155 = vunpack.c.l.s4 839922192
    %v156 = vunpack.c.0.s8 %v155
    %v157 = vperm.slane %v144, %v156
    %v159 = vunpack.c.l.s4 839922192
    %v160 = vunpack.c.0.s8 %v159
    %v161 = vperm.slane %v151, %v160
    %v164 = vmul.f32 %v37, %v157
    %v165 = vmul.f32 %v38, %v161
    %166 = vst [vmem:[#allocation5] sm:$0xff] %v164
    %167 = vst [vmem:[#allocation5 + $0x8] sm:$0xff] %v165
    // Predicated region
    $region26: #{tpu_custom_call.1} parent=1 // pred_check
      _
    $region27: #{tpu_custom_call.1} parent=1 // pred_check_branch
      %169 = sbr.rel (0) target = $region29
    $region28: #{tpu_custom_call.1} parent=1 // pred_region
      %171 = vsyncadd [#allocation4], 0
      %s172 = sshll.u32 [#allocation5], 4
      %s173 = int_to_ptr.vmem [resolvable:$true] %s172
      %s174 = sshll.u32 %s5, 4
      %s175 = int_to_ptr.hbm [resolvable:$true] %s174
      %180 = dma.vmem_to_hbm [thread:$0]  %s173, 256, %s175, [#allocation4], 128, 128, 8
    $region29: #{tpu_custom_call.1} parent=1 // pred_fallthru
      _
    // Predicated region
    $region30: #{tpu_custom_call.1} parent=1 // pred_check
      _
    $region31: #{tpu_custom_call.1} parent=1 // pred_check_branch
      %182 = sbr.rel (0) target = $region33
    $region32: #{tpu_custom_call.1} parent=1 // pred_region
      %184 = dma.done [#allocation4], 256
    $region33: #{tpu_custom_call.1} parent=1 // pred_fallthru
      _
    %185 = vsyncpa [#allocation3], 1
    %186 = vsyncpa [#allocation4], 1

</llo_original>
